<compile_context>
chip_gen: v5e
topology: v5e:2x2
jax: 0.10.0
libtpu: 0.0.40
codegen_flags: <defaults>
</compile_context>

<pallas_src>
import functools

import jax
import jax.numpy as jnp
from jax.experimental import pallas as pl
from jax.experimental.pallas import tpu as pltpu


def _first_pos_neg_loss_kernel(x_ref, o_ref, acc_ref, *, c, n_true,
                               lane_width, tile_rows, inv_n):
    g = pl.program_id(0)

    @pl.when(g == 0)
    def _init():
        acc_ref[...] = jnp.zeros_like(acc_ref)

    x = x_ref[...].astype(jnp.float32)                      # (tile_rows, lane_width)

    # Global flat index of every element in this tile.
    row = jax.lax.broadcasted_iota(jnp.int32, (tile_rows, lane_width), 0)
    col = jax.lax.broadcasted_iota(jnp.int32, (tile_rows, lane_width), 1)
    flat_idx = (g * tile_rows + row) * lane_width + col

    valid = flat_idx < n_true                               # mask padded tail
    y = jnp.where((flat_idx % c) == 0, 1.0, 0.0).astype(jnp.float32)

    # Numerically stable BCE-with-logits (same formulation PyTorch uses):
    #   l(x, y) = max(x, 0) - x*y + log1p(exp(-|x|))
    loss_el = jnp.maximum(x, 0.0) - x * y + jnp.log1p(jnp.exp(-jnp.abs(x)))
    loss_el = jnp.where(valid, loss_el, 0.0)

    # Reduce tile -> (8, lane_width) partial via leading-dim split + elementwise
    # adds (VPU only; no cross-lane movement), then accumulate.
    partial = jnp.sum(loss_el.reshape(tile_rows // 8, 8, lane_width), axis=0)
    acc_ref[...] += partial

    @pl.when(g == pl.num_programs(0) - 1)
    def _finalize():
        # Single cross-lane/sublane reduce + constant multiply, once.
        o_ref[0, 0] = jnp.sum(acc_ref[...]) * inv_n


def first_pos_neg_loss(res, num_neg_samples, *, lane_width=512, max_tile_rows=1024):
    """Pallas implementation of FirstPosNegLoss.forward.

    res: any-shaped array of logits whose total size is divisible by
         (num_neg_samples + 1).  Returns a scalar float32 loss (mean BCE).
    """
    c = int(num_neg_samples) + 1
    flat = jnp.ravel(res)
    n = flat.size
    if n % c != 0:
        raise ValueError(f"res.size={n} not divisible by num_neg+1={c}")

    lw = int(lane_width)
    assert lw % 128 == 0, "lane_width must be a multiple of 128"
    assert max_tile_rows % 8 == 0, "max_tile_rows must be a multiple of 8"

    # Lane-dense layout: (rows, lw), rows a multiple of the tile height.
    rows_needed = (n + lw - 1) // lw
    tile_rows = min(int(max_tile_rows), max(8, ((rows_needed + 7) // 8) * 8))
    num_tiles = max(1, (rows_needed + tile_rows - 1) // tile_rows)
    rows = num_tiles * tile_rows
    padded = rows * lw
    if padded != n:
        flat = jnp.pad(flat, (0, padded - n))
    mat = jnp.reshape(flat, (rows, lw))

    kernel = functools.partial(
        _first_pos_neg_loss_kernel,
        c=c, n_true=n, lane_width=lw, tile_rows=tile_rows, inv_n=float(1.0 / n))

    out = pl.pallas_call(
        kernel,
        out_shape=jax.ShapeDtypeStruct((1, 1), jnp.float32),
        grid_spec=pltpu.PrefetchScalarGridSpec(
            num_scalar_prefetch=0,
            grid=(num_tiles,),
            in_specs=[pl.BlockSpec((tile_rows, lw), lambda g: (g, 0))],
            out_specs=pl.BlockSpec((1, 1), lambda g: (0, 0),
                                   memory_space=pltpu.MemorySpace.SMEM),
            scratch_shapes=[pltpu.VMEM((8, lw), jnp.float32)],
        ),
        compiler_params=pltpu.CompilerParams(
            dimension_semantics=("arbitrary",),
        ),
    )(mat)
    return out[0, 0]


def _reference_loss(res, num_neg_samples):
    # pure-JAX reference for correctness check
    c = num_neg_samples + 1
    x = jnp.reshape(res, (-1, c)).astype(jnp.float32)
    y = jnp.zeros_like(x).at[:, 0].set(1.0)
    loss = jnp.maximum(x, 0.0) - x * y + jnp.log1p(jnp.exp(-jnp.abs(x)))
    return jnp.mean(loss)


if __name__ == "__main__":
    key = jax.random.PRNGKey(0)
    k1, k2, k3 = jax.random.split(key, 3)
    num_neg = 7  # C = 8 columns per row

    # Case 1: multiple grid tiles, element count exactly fills the lane-dense tiles.
    res1 = jax.random.normal(k1, (512 * (num_neg + 1),), dtype=jnp.float32)   # N=4096
    loss1 = jax.block_until_ready(
        first_pos_neg_loss(res1, num_neg, lane_width=128, max_tile_rows=8))   # 4 tiles
    ref1 = _reference_loss(res1, num_neg)
    assert jnp.allclose(loss1, ref1, rtol=1e-5, atol=1e-5), (loss1, ref1)

    # Case 2: ragged tail — N not a multiple of lane width; padding must be masked.
    res2 = jax.random.normal(k2, (50 * (num_neg + 1),), dtype=jnp.float32)    # N=400
    loss2 = jax.block_until_ready(
        first_pos_neg_loss(res2, num_neg, lane_width=128, max_tile_rows=8))
    ref2 = _reference_loss(res2, num_neg)
    assert jnp.allclose(loss2, ref2, rtol=1e-5, atol=1e-5), (loss2, ref2)

    # Case 3: default production tiling (lane_width=512, adaptive tile height).
    res3 = jax.random.normal(k3, (2048 * (num_neg + 1),), dtype=jnp.float32)  # N=16384
    loss3 = jax.block_until_ready(first_pos_neg_loss(res3, num_neg))
    ref3 = _reference_loss(res3, num_neg)
    assert jnp.allclose(loss3, ref3, rtol=1e-5, atol=1e-5), (loss3, ref3)

    print("KERNEL_OK")
</pallas_src>

<mosaic_0001>
module attributes {stable_mosaic.version = 11 : i64} {
  func.func @_first_pos_neg_loss_kernel(%arg0: i32, %arg1: memref<8x128xf32, #tpu.memory_space<vmem>>, %arg2: memref<1x1xf32, #tpu.memory_space<smem>>, %arg3: memref<8x128xf32, #tpu.memory_space<vmem>>) attributes {dimension_semantics = [#tpu.dimension_semantics<arbitrary>], iteration_bounds = array<i64: 4>, scalar_prefetch = 0 : i64, scratch_operands = 1 : i64, tpu.core_type = #tpu.core_type<tc>, window_params = [{transform_indices = @transform_0, window_bounds = array<i64: 8, 128>}, {transform_indices = @transform_1, window_bounds = array<i64: 1, 1>}]} {
    %c0_i32 = arith.constant 0 : i32
    %0 = arith.cmpi eq, %arg0, %c0_i32 : i32
    %1 = arith.extui %0 : i1 to i32
    %c0_i32_0 = arith.constant 0 : i32
    %2 = arith.cmpi ne, %1, %c0_i32_0 : i32
    scf.if %2 {
      %cst_18 = arith.constant 0.000000e+00 : f32
      %55 = vector.broadcast %cst_18 : f32 to vector<8x128xf32>
      %c0_19 = arith.constant 0 : index
      %c0_20 = arith.constant 0 : index
      %56 = vector.load %arg3[%c0_19, %c0_20] : memref<8x128xf32, #tpu.memory_space<vmem>>, vector<8x128xf32>
      tpu.vector_store %arg3[%c0_19, %c0_20], %55 {strides = array<i32>} : memref<8x128xf32, #tpu.memory_space<vmem>>, vector<8x128xf32>,
    } else {
    }
    %c0 = arith.constant 0 : index
    %c0_1 = arith.constant 0 : index
    %3 = vector.load %arg1[%c0, %c0_1] : memref<8x128xf32, #tpu.memory_space<vmem>>, vector<8x128xf32>
    %4 = tpu.iota {dimensions = array<i32: 0>} : vector<8x128xi32>
    %5 = tpu.iota {dimensions = array<i32: 1>} : vector<8x128xi32>
    %c8_i32 = arith.constant 8 : i32
    %6 = arith.muli %arg0, %c8_i32 : i32
    %7 = vector.broadcast %6 : i32 to vector<8x128xi32>
    %8 = arith.addi %7, %4 : vector<8x128xi32>
    %c128_i32 = arith.constant 128 : i32
    %9 = vector.broadcast %c128_i32 : i32 to vector<8x128xi32>
    %10 = arith.muli %8, %9 : vector<8x128xi32>
    %11 = arith.addi %10, %5 : vector<8x128xi32>
    %c4096_i32 = arith.constant 4096 : i32
    %12 = vector.broadcast %c4096_i32 : i32 to vector<8x128xi32>
    %13 = arith.cmpi slt, %11, %12 : vector<8x128xi32>
    %c8_i32_2 = arith.constant 8 : i32
    %c0_i32_3 = arith.constant 0 : i32
    %14 = arith.cmpi eq, %c8_i32_2, %c0_i32_3 : i32
    %c1_i32 = arith.constant 1 : i32
    %15 = arith.select %14, %c1_i32, %c8_i32_2 : i32
    %16 = vector.broadcast %15 : i32 to vector<8x128xi32>
    %17 = arith.remsi %11, %16 : vector<8x128xi32>
    %c0_i32_4 = arith.constant 0 : i32
    %18 = vector.broadcast %c0_i32_4 : i32 to vector<8x128xi32>
    %19 = arith.cmpi ne, %17, %18 : vector<8x128xi32>
    %c0_i32_5 = arith.constant 0 : i32
    %20 = vector.broadcast %c0_i32_5 : i32 to vector<8x128xi32>
    %21 = arith.cmpi slt, %17, %20 : vector<8x128xi32>
    %c0_i32_6 = arith.constant 0 : i32
    %22 = arith.cmpi slt, %15, %c0_i32_6 : i32
    %23 = vector.broadcast %22 : i1 to vector<8x128xi1>
    %24 = vector.broadcast %23 : vector<8x128xi1> to vector<8x128xi1>
    %25 = arith.xori %21, %24 : vector<8x128xi1>
    %26 = arith.andi %25, %19 : vector<8x128xi1>
    %27 = vector.broadcast %15 : i32 to vector<8x128xi32>
    %28 = arith.addi %17, %27 : vector<8x128xi32>
    %29 = arith.select %26, %28, %17 : vector<8x128xi1>, vector<8x128xi32>
    %c0_i32_7 = arith.constant 0 : i32
    %30 = vector.broadcast %c0_i32_7 : i32 to vector<8x128xi32>
    %31 = arith.cmpi eq, %29, %30 : vector<8x128xi32>
    %cst = arith.constant 1.000000e+00 : f32
    %cst_8 = arith.constant 0.000000e+00 : f32
    %32 = vector.broadcast %cst : f32 to vector<8x128xf32>
    %33 = vector.broadcast %cst_8 : f32 to vector<8x128xf32>
    %34 = arith.select %31, %32, %33 : vector<8x128xi1>, vector<8x128xf32>
    %cst_9 = arith.constant 0.000000e+00 : f32
    %35 = vector.broadcast %cst_9 : f32 to vector<8x128xf32>
    %36 = arith.maximumf %3, %35 : vector<8x128xf32>
    %37 = arith.mulf %3, %34 : vector<8x128xf32>
    %38 = arith.subf %36, %37 : vector<8x128xf32>
    %39 = math.absf %3 : vector<8x128xf32>
    %cst_10 = arith.constant 0.000000e+00 : f32
    %40 = vector.broadcast %cst_10 : f32 to vector<8x128xf32>
    %41 = arith.subf %40, %39 : vector<8x128xf32>
    %42 = math.exp %41 : vector<8x128xf32>
    %43 = math.log1p %42 : vector<8x128xf32>
    %44 = arith.addf %38, %43 : vector<8x128xf32>
    %cst_11 = arith.constant 0.000000e+00 : f32
    %45 = vector.broadcast %cst_11 : f32 to vector<8x128xf32>
    %46 = arith.select %13, %44, %45 : vector<8x128xi1>, vector<8x128xf32>
    %47 = vector.shape_cast %46 : vector<8x128xf32> to vector<1x8x128xf32>
    %cst_12 = arith.constant dense<0.000000e+00> : vector<8x128xf32>
    %48 = vector.multi_reduction <add>, %47, %cst_12 [0] : vector<1x8x128xf32> to vector<8x128xf32>
    %c0_13 = arith.constant 0 : index
    %c0_14 = arith.constant 0 : index
    %49 = vector.load %arg3[%c0_13, %c0_14] : memref<8x128xf32, #tpu.memory_space<vmem>>, vector<8x128xf32>
    %50 = arith.addf %49, %48 : vector<8x128xf32>
    %c0_15 = arith.constant 0 : index
    %c0_16 = arith.constant 0 : index
    %51 = vector.load %arg3[%c0_15, %c0_16] : memref<8x128xf32, #tpu.memory_space<vmem>>, vector<8x128xf32>
    tpu.vector_store %arg3[%c0_15, %c0_16], %50 {strides = array<i32>} : memref<8x128xf32, #tpu.memory_space<vmem>>, vector<8x128xf32>,
    %c3_i32 = arith.constant 3 : i32
    %52 = arith.cmpi eq, %arg0, %c3_i32 : i32
    %53 = arith.extui %52 : i1 to i32
    %c0_i32_17 = arith.constant 0 : i32
    %54 = arith.cmpi ne, %53, %c0_i32_17 : i32
    scf.if %54 {
      %c0_18 = arith.constant 0 : index
      %c0_19 = arith.constant 0 : index
      %55 = vector.load %arg3[%c0_18, %c0_19] : memref<8x128xf32, #tpu.memory_space<vmem>>, vector<8x128xf32>
      %56 = vector.shape_cast %55 : vector<8x128xf32> to vector<1x8x128xf32>
      %cst_20 = arith.constant dense<0.000000e+00> : vector<1xf32>
      %57 = vector.multi_reduction <add>, %56, %cst_20 [1, 2] : vector<1x8x128xf32> to vector<1xf32>
      %58 = vector.shape_cast %57 : vector<1xf32> to vector<1x1x1xf32>
      %59 = vector.extract %58[0, 0, 0] : f32 from vector<1x1x1xf32>
      %cst_21 = arith.constant 2.44140625E-4 : f32
      %60 = arith.mulf %59, %cst_21 : f32
      %c0_22 = arith.constant 0 : index
      %c0_23 = arith.constant 0 : index
      %61 = memref.load %arg2[%c0_22, %c0_23] : memref<1x1xf32, #tpu.memory_space<smem>>
      memref.store %60, %arg2[%c0_22, %c0_23] : memref<1x1xf32, #tpu.memory_space<smem>>
    } else {
    }
    return
  }
  func.func @transform_0(%arg0: i32) -> (i32, i32) {
    %c0_i32 = arith.constant 0 : i32
    %c0_i32_0 = arith.constant 0 : i32
    return %arg0, %c0_i32 : i32, i32
  }
  func.func @transform_1(%arg0: i32) -> (i32, i32) {
    %c0_i32 = arith.constant 0 : i32
    %c0_i32_0 = arith.constant 0 : i32
    %c0_i32_1 = arith.constant 0 : i32
    return %c0_i32, %c0_i32_0 : i32, i32
  }
}

</mosaic_0001>

<llo_original>
// kernel: tpu_custom_call.1
$region0: #{tpu_custom_call.1}
  #allocation0 [shape = 'u32[]', space=smem, size = 0x4, offset = 0x4, fixed_abs, tag = 'smem constant byte address 0x4 - core index']
  #allocation1 [shape = 'u32[72,128]{1,0:T(1,128)}', space=vmem, size = 0x9000, scoped, tag = 'internal scratch']
  #allocation2 [shape = 'f32[8,128]{1,0:T(8,128)}', space=vmem, size = 0x1000, scoped, tag = 'scratch operand']
  %s0 = inlined_call_operand.hbm [shape: f32[32,128], index: 0, kind: input, shape index: {}]
  %s1 = inlined_call_operand.hbm [shape: f32[1,1], index: 1, kind: output, shape index: {}]
  %s2 = sld [smem:[#allocation0]]
  $region49: #{tpu_custom_call.1} parent=0
    _
  %s4 = ssub.s32 1, %s2
  %s5 = scalar_select 0, %s4, %s2
  $region1: #{tpu_custom_call.1} parent=0
    #allocation3 [shape = 'u8[8192]{0}', space=vmem, size = 0x2000, scoped, tag = 'input window, operand 0']
    #allocation4 [shape = 's32[2]{0}', space=sflag, size = 0x8, scoped, tag = 'scoped memory for tpu_custom_call.1']
    #allocation5 [shape = 's32[2]{0}', space=sflag, size = 0x8, scoped, tag = 'scoped memory for tpu_custom_call.1']
    #allocation6 [shape = 'u8[512]{0}', space=smem, size = 0x200, scoped, tag = 'output window, operand 0, single buffered']
    %6 = vsyncpa [#allocation4], 0
    %s7 = scalar_lea.sflag [#allocation4], 1
    %8 = vsyncpa %s7, 0
    %9 = vsyncpa [#allocation5], 0
    loop: start=0, step=1, limit=6
    $region2: #{tpu_custom_call.1} parent=1 // loop_pre_header
      _
    $region3: #{tpu_custom_call.1} parent=1 // loop_header
      %s11 = sphi 0, %s15
      %p12 = scmp.ge.s32.totalorder %s11, 6
      %s21 = sphi 0, %s23
      %s24 = sphi 0, %s21
      %s25 = sphi 0, %s24
      %s41 = sphi 0, %s25
      %s45 = sphi 0, %s45
      %s47 = sphi 0, %s45
      %s48 = sphi 0, %s47
      %s62 = sphi 0, %s48
    $region4: #{tpu_custom_call.1} parent=1 // loop_header_branch
      %14 = sbr.rel (%p12) target = $region8
    $region5: #{tpu_custom_call.1} parent=1 // loop_body
      %s16 = ssub.s32 %s11, 1
      %s17 = ssub.s32 %s11, 2
      %s18 = sadd.s32 %s11, 1
      %s19 = ssub.s32 %s11, %s18
      %p20 = scmp.eq.s32.totalorder %s19, 0
      %s22 = sadd.s32 %s21, 1
      %s23 = scalar_select %p20, %s21, %s22
      %p26 = pneg %p20
      %p27 = scmp.eq.s32.totalorder %s11, 3
      %p28 = por %p26, %p27
      %p29 = scmp.ne.s32.totalorder %s21, %s24
      %p30 = scmp.eq.s32.totalorder %s11, 0
      %p31 = por %p29, %p30
      %p32 = scmp.ne.s32.totalorder %s21, %s24
      %p33 = scmp.eq.s32.totalorder %s16, 3
      %p34 = por %p32, %p33
      %p35 = scmp.ne.s32.totalorder %s24, %s25
      %p36 = scmp.eq.s32.totalorder %s16, 0
      %p37 = por %p35, %p36
      %p38 = scmp.ne.s32.totalorder %s24, %s25
      %p39 = scmp.eq.s32.totalorder %s17, 3
      %p40 = por %p38, %p39
      %p42 = scmp.ne.s32.totalorder %s25, %s41
      %p43 = scmp.eq.s32.totalorder %s17, 0
      %p44 = por %p42, %p43
      %s46 = sadd.s32 %s45, 1
      %p49 = scmp.eq.s32.totalorder %s11, 3
      %p50 = scmp.ne.s32.totalorder %s45, %s47
      %p51 = scmp.eq.s32.totalorder %s11, 0
      %p52 = por %p50, %p51
      %p53 = scmp.ne.s32.totalorder %s45, %s47
      %p54 = scmp.eq.s32.totalorder %s16, 3
      %p55 = por %p53, %p54
      %p56 = scmp.ne.s32.totalorder %s47, %s48
      %p57 = scmp.eq.s32.totalorder %s16, 0
      %p58 = por %p56, %p57
      %p59 = scmp.ne.s32.totalorder %s47, %s48
      %p60 = scmp.eq.s32.totalorder %s17, 3
      %p61 = por %p59, %p60
      %p63 = scmp.ne.s32.totalorder %s48, %s62
      %p64 = scmp.eq.s32.totalorder %s17, 0
      %p65 = por %p63, %p64
      %p66 = scmp.le.s32.totalorder 1, %s11
      %p67 = scmp.lt.s32.totalorder %s11, 5
      %p68 = pnand %p66, %p67
      %p69 = pneg %p68
      // Predicated region
      $region9: #{tpu_custom_call.1} parent=5 // pred_check
        _
      $region10: #{tpu_custom_call.1} parent=5 // pred_check_branch
        %71 = sbr.rel (%p68) target = $region12
      $region11: #{tpu_custom_call.1} parent=5 // pred_region
        %s72 = ssub.s32 %s11, 1
      $region12: #{tpu_custom_call.1} parent=5 // pred_fallthru
        _
      %p73 = scmp.lt.s32.totalorder %s11, 4
      // Predicated region
      $region13: #{tpu_custom_call.1} parent=5 // pred_check
        %p74 = pneg %p73
      $region14: #{tpu_custom_call.1} parent=5 // pred_check_branch
        %76 = sbr.rel (%p74) target = $region16
      $region15: #{tpu_custom_call.1} parent=5 // pred_region
        // Predicated region
        $region17: #{tpu_custom_call.1} parent=15 // pred_check
          %p77 = pneg %p31
        $region18: #{tpu_custom_call.1} parent=15 // pred_check_branch
          %79 = sbr.rel (%p77) target = $region20
        $region19: #{tpu_custom_call.1} parent=15 // pred_region
          %s80 = sand.u32 %s21, 1
          %s81 = scalar_lea.sflag [#allocation4], %s80
          %s82 = sand.u32 %s21, 1
          %s83 = smul.addr %s82, 8
          %s84 = scalar_lea.vmem [#allocation3], %s83
          %86 = vsyncadd %s81, 0
          %s87 = smul.addr %s11, 8
          %s88 = scalar_lea.hbm %s0, %s87
          %s90 = sshll.u32 %s88, 4
          %s91 = int_to_ptr.hbm [resolvable:$true] %s90
          %s92 = sshll.u32 %s84, 4
          %s93 = int_to_ptr.vmem [resolvable:$true] %s92
          %95 = dma.hbm_to_vmem [thread:$0]  %s91, 128, %s93, %s81
        $region20: #{tpu_custom_call.1} parent=15 // pred_fallthru
          _
      $region16: #{tpu_custom_call.1} parent=5 // pred_fallthru
        _
      %p96 = scmp.le.s32.totalorder 1, %s11
      %p97 = scmp.lt.s32.totalorder %s11, 5
      %p98 = pnand %p96, %p97
      %p99 = pneg %p98
      // Predicated region
      $region21: #{tpu_custom_call.1} parent=5 // pred_check
        _
      $region22: #{tpu_custom_call.1} parent=5 // pred_check_branch
        %101 = sbr.rel (%p98) target = $region24
      $region23: #{tpu_custom_call.1} parent=5 // pred_region
        %s102 = ssub.s32 %s11, 1
        %s103 = sand.u32 %s24, 1
        %s104 = scalar_lea.sflag [#allocation4], %s103
        %s105 = sand.u32 %s24, 1
        %s106 = smul.addr %s105, 8
        %s107 = scalar_lea.vmem [#allocation3], %s106
        // Predicated region
        $region25: #{tpu_custom_call.1} parent=23 // pred_check
          %p108 = pneg %p37
        $region26: #{tpu_custom_call.1} parent=23 // pred_check_branch
          %110 = sbr.rel (%p108) target = $region28
        $region27: #{tpu_custom_call.1} parent=23 // pred_region
          %112 = dma.done %s104, 128
        $region28: #{tpu_custom_call.1} parent=23 // pred_fallthru
          _
        %s113 = sand.u32 %s24, 1
        %s114 = scalar_lea.sflag [#allocation4], %s113
        %s115 = sand.u32 %s24, 1
        %s116 = smul.addr %s115, 8
        %s117 = scalar_lea.vmem [#allocation3], %s116
        %p118 = pneg %p37
        %p119 = pneg %p34
        %p120 = pneg %p58
        %p121 = pneg %p55
        %p122 = scmp.eq.s32.totalorder %s16, 0
        // Predicated region
        $region29: #{tpu_custom_call.1} parent=23 // pred_check
          %p123 = pneg %p122
        $region30: #{tpu_custom_call.1} parent=23 // pred_check_branch
          %125 = sbr.rel (%p123) target = $region32
        $region31: #{tpu_custom_call.1} parent=23 // pred_region
          %126 = vst [vmem:[#allocation2] sm:$0xff] 0.0
        $region32: #{tpu_custom_call.1} parent=23 // pred_fallthru
          _
        %v127 = vld [vmem:[%s107] sm:$0xff]
        %v128 = vlaneseq
        %v129 = vshrl.u32 %v128, 7
        %v130 = vlaneseq
        %v131 = vand.u32 %v130, 127
        %s132 = smul.u32 %s16, 8
        %v133 = vstv %s132
        %v134 = vadd.s32 %v133, %v129
        %v135 = vmul.u32 %v134, 128
        %v136 = vadd.s32 %v135, %v131
        %vm137 = vcmp.lt.s32.totalorder %v136, 4096
        %vm138 = vcmp.lt.s32.totalorder %v136, 0
        %v139 = vsub.s32 0, %v136
        %v140 = vsel %vm138, %v139, %v136
        %v141 = vshrl.u32 %v140, 3
        %v142 = vand.u32 %v140, 7
        %v143 = vsub.s32 0, %v142
        %v144 = vsel %vm138, %v143, %v142
        %vm145 = vcmp.ne.s32.totalorder %v144, 0
        %vm146 = vcmp.lt.s32.totalorder %v144, 0
        %vm147 = vmand %vm146, %vm145
        %v148 = vadd.s32 %v144, 8
        %v149 = vsel %vm147, %v148, %v144
        %vm150 = vcmp.eq.s32.totalorder %v149, 0
        %v151 = vsel %vm150, 1.0, 0.0
        %v152 = vmax.f32 %v127, 0.0
        %v153 = vmul.f32 %v127, %v151
        %v154 = vsub.f32 %v152, %v153
        %v155 = vand.u32 2147483647, %v127
        %v156 = vsub.f32 0.0, %v155
        %v157 = vmul.f32 %v156, 1.442695
        %v158 = vpow.pop %v157
        %v159 = vadd.f32 %v158, 1.0
        %v160 = vlog2.pop %v159
        %v161 = vmul.f32 %v160, 0.6931472
        %v162 = vmul.f32 -0.5, %v158
        %v163 = vadd.f32 %v162, 1.0
        %v164 = vmul.f32 %v163, %v158
        %v165 = vand.u32 2147483647, %v158
        %vm166 = vcmp.lt.f32.partialorder %v165, 0.0004427343
        %v167 = vsel %vm166, %v164, %v161
        %v168 = vadd.f32 %v154, %v167
        %v169 = vsel %vm137, %v168, 0.0
        %v170 = vadd.f32 %v169, 0.0
        %v171 = vld [vmem:[#allocation2] sm:$0xff]
        %v172 = vadd.f32 %v171, %v170
        %173 = vst [vmem:[#allocation2] sm:$0xff] %v172
        %p174 = scmp.eq.s32.totalorder %s16, 3
        // Predicated region
        $region33: #{tpu_custom_call.1} parent=23 // pred_check
          %p175 = pneg %p174
        $region34: #{tpu_custom_call.1} parent=23 // pred_check_branch
          %177 = sbr.rel (%p175) target = $region36
        $region35: #{tpu_custom_call.1} parent=23 // pred_region
          %v178 = vld [vmem:[#allocation2] sm:$0xff]
          %179 = vadd.xlane.f32.xlu0 %v178
          %v180 = vpop.xlane.xlu0 %179
          %v181 = vrot.slane %v180, 4
          %v182 = vadd.f32 %v180, %v181
          %v183 = vrot.slane %v182, 2
          %v184 = vadd.f32 %v182, %v183
          %v185 = vrot.slane %v184, 1
          %v186 = vadd.f32 %v184, %v185
          %s187 = vtos %v186
          %s188 = smul.f32 %s187, 0.00024414063
          %s189 = scalar_lea.smem [#allocation6], 0
          %190 = sst [smem:[%s189]] %s188
        $region36: #{tpu_custom_call.1} parent=23 // pred_fallthru
          _
        // Predicated region
        $region37: #{tpu_custom_call.1} parent=23 // pred_check
          %p191 = pneg %p55
        $region38: #{tpu_custom_call.1} parent=23 // pred_check_branch
          %193 = sbr.rel (%p191) target = $region40
        $region39: #{tpu_custom_call.1} parent=23 // pred_region
          %195 = vsyncadd [#allocation5], 0
          %s197 = sshll.u32 %s1, 4
          %s198 = int_to_ptr.hbm [resolvable:$true] %s197
          %200 = dma.smem_to_hbm [#allocation6], 16, %s198, [#allocation5]
        $region40: #{tpu_custom_call.1} parent=23 // pred_fallthru
          _
        // Predicated region
        $region41: #{tpu_custom_call.1} parent=23 // pred_check
          %p201 = pneg %p55
        $region42: #{tpu_custom_call.1} parent=23 // pred_check_branch
          %203 = sbr.rel (%p201) target = $region44
        $region43: #{tpu_custom_call.1} parent=23 // pred_region
          %205 = dma.done [#allocation5], 16
        $region44: #{tpu_custom_call.1} parent=23 // pred_fallthru
          _
        %206 = sfence
      $region24: #{tpu_custom_call.1} parent=5 // pred_fallthru
        _
      %p207 = scmp.le.s32.totalorder 2, %s11
      // Predicated region
      $region45: #{tpu_custom_call.1} parent=5 // pred_check
        %p208 = pneg %p207
      $region46: #{tpu_custom_call.1} parent=5 // pred_check_branch
        %210 = sbr.rel (%p208) target = $region48
      $region47: #{tpu_custom_call.1} parent=5 // pred_region
        %s211 = ssub.s32 %s11, 2
      $region48: #{tpu_custom_call.1} parent=5 // pred_fallthru
        _
    $region6: #{tpu_custom_call.1} parent=1 // loop_footer
      %s15 = sadd.s32 1, %s11
    $region7: #{tpu_custom_call.1} parent=1 // loop_footer_branch
      %10 = sbr.rel target = $region3
    $region8: #{tpu_custom_call.1} parent=1 // loop_exit
      _
    %212 = vsyncpa [#allocation4], 1
    %s213 = scalar_lea.sflag [#allocation4], 1
    %214 = vsyncpa %s213, 1
    %215 = vsyncpa [#allocation5], 1
    %s216 = scalar_lea.sflag [#allocation5], 1
    %217 = vsyncpa %s216, 1

</llo_original>
